<compile_context>
chip_gen: v6e
topology: v6e:2x2x1
jax: 0.10.0
libtpu: 0.0.40
codegen_flags: <defaults>
</compile_context>

<pallas_src>
import jax
import jax.numpy as jnp
from jax.experimental import pallas as pl
from jax.experimental.pallas import tpu as pltpu

LANE = 128          # TPU vreg lane width
BATCH_TILE = 128    # batch rows per grid step (fills the MXU M dimension)


def _round_up(x, m):
    return ((x + m - 1) // m) * m


def actor_forward_kernel(x_ref, w1_ref, b1_ref, w2_ref, b2_ref, w3_ref, b3_ref,
                         out_ref):
    # fc1 + relu : bf16 MXU matmul, f32 accumulate + elementwise
    x = x_ref[...].astype(jnp.bfloat16)
    h1 = jnp.dot(x, w1_ref[...], preferred_element_type=jnp.float32)
    h1 = jnp.maximum(h1 + b1_ref[...], 0.0)
    # fc2 + relu
    h2 = jnp.dot(h1.astype(jnp.bfloat16), w2_ref[...],
                 preferred_element_type=jnp.float32)
    h2 = jnp.maximum(h2 + b2_ref[...], 0.0)
    # mu + tanh (output feature axis padded to a full 128-lane width)
    mu = jnp.dot(h2.astype(jnp.bfloat16), w3_ref[...],
                 preferred_element_type=jnp.float32)
    out_ref[...] = jnp.tanh(mu + b3_ref[...]).astype(out_ref.dtype)


def actor_forward(state, params, *, batch_tile=BATCH_TILE):
    """state: [B, input_dim] float32.  params: bf16 weights [in,out], f32 biases [1,out]."""
    w1, b1 = params["w1"], params["b1"]
    w2, b2 = params["w2"], params["b2"]
    w3, b3 = params["w3"], params["b3"]
    B, input_dim = state.shape
    n_actions = w3.shape[1]

    # Lane-dense output: pad n_actions up to a multiple of 128 lanes.
    n_out_p = _round_up(n_actions, LANE)
    if n_out_p != n_actions:
        w3 = jnp.pad(w3, ((0, 0), (0, n_out_p - n_actions)))
        b3 = jnp.pad(b3, ((0, 0), (0, n_out_p - n_actions)))

    # Pad the batch so every grid step works on a full, aligned tile.
    B_p = _round_up(B, batch_tile)
    if B_p != B:
        state = jnp.pad(state, ((0, B_p - B), (0, 0)))

    grid = (B_p // batch_tile,)

    # Weights/biases: one block covering the whole array; the index_map always
    # returns block (0, 0) so they are fetched once and stay resident in VMEM
    # across all grid steps.
    def resident(arr):
        return pl.BlockSpec(arr.shape, lambda i: (0, 0))

    out = pl.pallas_call(
        actor_forward_kernel,
        out_shape=jax.ShapeDtypeStruct((B_p, n_out_p), jnp.float32),
        grid=grid,
        in_specs=[
            pl.BlockSpec((batch_tile, input_dim), lambda i: (i, 0)),
            resident(w1), resident(b1),
            resident(w2), resident(b2),
            resident(w3), resident(b3),
        ],
        out_specs=pl.BlockSpec((batch_tile, n_out_p), lambda i: (i, 0)),
        compiler_params=pltpu.CompilerParams(
            dimension_semantics=("parallel",)),
    )(state, w1, b1, w2, b2, w3, b3)

    return out[:B, :n_actions]


def init_actor_params(key, input_dim, fc1_dims, fc2_dims, n_actions):
    """nn.Linear-style init: U(-1/sqrt(fan_in), 1/sqrt(fan_in)).
    Weights stored transposed as [in, out] in bf16; biases as [1, out] in f32."""
    def linear(k, fan_in, fan_out):
        kw, kb = jax.random.split(k)
        bound = 1.0 / jnp.sqrt(fan_in)
        w = jax.random.uniform(kw, (fan_in, fan_out), jnp.float32, -bound, bound)
        b = jax.random.uniform(kb, (1, fan_out), jnp.float32, -bound, bound)
        return w.astype(jnp.bfloat16), b

    k1, k2, k3 = jax.random.split(key, 3)
    w1, b1 = linear(k1, input_dim, fc1_dims)
    w2, b2 = linear(k2, fc1_dims, fc2_dims)
    w3, b3 = linear(k3, fc2_dims, n_actions)
    return {"w1": w1, "b1": b1, "w2": w2, "b2": b2, "w3": w3, "b3": b3}


def actor_forward_ref(state, params):
    """Pure-JAX reference mirroring the kernel's bf16-input / f32-accumulate math."""
    x = state.astype(jnp.bfloat16)
    h1 = jnp.maximum(
        jnp.dot(x, params["w1"], preferred_element_type=jnp.float32)
        + params["b1"], 0.0)
    h2 = jnp.maximum(
        jnp.dot(h1.astype(jnp.bfloat16), params["w2"],
                preferred_element_type=jnp.float32) + params["b2"], 0.0)
    return jnp.tanh(
        jnp.dot(h2.astype(jnp.bfloat16), params["w3"],
                preferred_element_type=jnp.float32) + params["b3"])


def actor_forward_ref_f32(state, params):
    """Full-f32 reference (PyTorch semantics) for a loose sanity check."""
    h1 = jnp.maximum(state @ params["w1"].astype(jnp.float32) + params["b1"], 0.0)
    h2 = jnp.maximum(h1 @ params["w2"].astype(jnp.float32) + params["b2"], 0.0)
    return jnp.tanh(h2 @ params["w3"].astype(jnp.float32) + params["b3"])


if __name__ == "__main__":
    # Small shapes consistent with the module: input_dims=(8,), fc1=32, fc2=32,
    # n_actions=4, batch=4.  (Realistic DDPG minibatches of 64-1024 reuse the
    # same batch-tiled grid unchanged.)
    batch, input_dim, fc1_dims, fc2_dims, n_actions = 4, 8, 32, 32, 4

    key = jax.random.PRNGKey(0)
    k_state, k_params = jax.random.split(key)
    state = jax.random.normal(k_state, (batch, input_dim), jnp.float32)
    params = init_actor_params(k_params, input_dim, fc1_dims, fc2_dims, n_actions)

    mu = jax.block_until_ready(actor_forward(state, params))
    assert mu.shape == (batch, n_actions)
    assert bool(jnp.all(jnp.isfinite(mu)))

    mu_ref = jax.block_until_ready(actor_forward_ref(state, params))
    assert jnp.allclose(mu, mu_ref, atol=2e-3, rtol=2e-3), "mismatch vs bf16 reference"

    mu_f32 = jax.block_until_ready(actor_forward_ref_f32(state, params))
    assert jnp.allclose(mu, mu_f32, atol=3e-2, rtol=3e-2), "mismatch vs f32 reference"

    print("KERNEL_OK")
</pallas_src>

<mosaic_0001>
module attributes {stable_mosaic.version = 11 : i64} {
  func.func @actor_forward_kernel(%arg0: i32, %arg1: memref<128x8xf32, #tpu.memory_space<vmem>>, %arg2: memref<8x32xbf16, #tpu.memory_space<vmem>>, %arg3: memref<1x32xf32, #tpu.memory_space<vmem>>, %arg4: memref<32x32xbf16, #tpu.memory_space<vmem>>, %arg5: memref<1x32xf32, #tpu.memory_space<vmem>>, %arg6: memref<32x128xbf16, #tpu.memory_space<vmem>>, %arg7: memref<1x128xf32, #tpu.memory_space<vmem>>, %arg8: memref<128x128xf32, #tpu.memory_space<vmem>>) attributes {dimension_semantics = [#tpu.dimension_semantics<parallel>], iteration_bounds = array<i64: 1>, scalar_prefetch = 0 : i64, scratch_operands = 0 : i64, tpu.core_type = #tpu.core_type<tc>, window_params = [{transform_indices = @transform_0, window_bounds = array<i64: 128, 8>}, {pipeline_mode = #tpu.pipeline_mode<synchronous>, transform_indices = @transform_1, window_bounds = array<i64: 8, 32>}, {pipeline_mode = #tpu.pipeline_mode<synchronous>, transform_indices = @transform_2, window_bounds = array<i64: 1, 32>}, {pipeline_mode = #tpu.pipeline_mode<synchronous>, transform_indices = @transform_3, window_bounds = array<i64: 32, 32>}, {pipeline_mode = #tpu.pipeline_mode<synchronous>, transform_indices = @transform_4, window_bounds = array<i64: 1, 32>}, {pipeline_mode = #tpu.pipeline_mode<synchronous>, transform_indices = @transform_5, window_bounds = array<i64: 32, 128>}, {pipeline_mode = #tpu.pipeline_mode<synchronous>, transform_indices = @transform_6, window_bounds = array<i64: 1, 128>}, {transform_indices = @transform_7, window_bounds = array<i64: 128, 128>}]} {
    %c0 = arith.constant 0 : index
    %c0_0 = arith.constant 0 : index
    %0 = vector.load %arg1[%c0, %c0_0] : memref<128x8xf32, #tpu.memory_space<vmem>>, vector<128x8xf32>
    %1 = arith.truncf %0 : vector<128x8xf32> to vector<128x8xbf16>
    %c0_1 = arith.constant 0 : index
    %c0_2 = arith.constant 0 : index
    %2 = vector.load %arg2[%c0_1, %c0_2] : memref<8x32xbf16, #tpu.memory_space<vmem>>, vector<8x32xbf16>
    %cst = arith.constant dense<0.000000e+00> : vector<128x32xf32>
    %3 = tpu.matmul %1, %2, %cst {dimension_numbers = #tpu.dot_dimension_numbers<[1], [0], [0], [1], [0, 0, 1, 1], [], []>} : vector<128x8xbf16>, vector<8x32xbf16>, vector<128x32xf32> -> vector<128x32xf32>
    %c0_3 = arith.constant 0 : index
    %c0_4 = arith.constant 0 : index
    %4 = vector.load %arg3[%c0_3, %c0_4] : memref<1x32xf32, #tpu.memory_space<vmem>>, vector<1x32xf32>
    %5 = vector.broadcast %4 : vector<1x32xf32> to vector<128x32xf32>
    %6 = arith.addf %3, %5 : vector<128x32xf32>
    %cst_5 = arith.constant 0.000000e+00 : f32
    %7 = vector.broadcast %cst_5 : f32 to vector<128x32xf32>
    %8 = arith.maximumf %6, %7 : vector<128x32xf32>
    %9 = arith.truncf %8 : vector<128x32xf32> to vector<128x32xbf16>
    %c0_6 = arith.constant 0 : index
    %c0_7 = arith.constant 0 : index
    %10 = vector.load %arg4[%c0_6, %c0_7] : memref<32x32xbf16, #tpu.memory_space<vmem>>, vector<32x32xbf16>
    %cst_8 = arith.constant dense<0.000000e+00> : vector<128x32xf32>
    %11 = tpu.matmul %9, %10, %cst_8 {dimension_numbers = #tpu.dot_dimension_numbers<[1], [0], [0], [1], [0, 0, 1, 1], [], []>} : vector<128x32xbf16>, vector<32x32xbf16>, vector<128x32xf32> -> vector<128x32xf32>
    %c0_9 = arith.constant 0 : index
    %c0_10 = arith.constant 0 : index
    %12 = vector.load %arg5[%c0_9, %c0_10] : memref<1x32xf32, #tpu.memory_space<vmem>>, vector<1x32xf32>
    %13 = vector.broadcast %12 : vector<1x32xf32> to vector<128x32xf32>
    %14 = arith.addf %11, %13 : vector<128x32xf32>
    %cst_11 = arith.constant 0.000000e+00 : f32
    %15 = vector.broadcast %cst_11 : f32 to vector<128x32xf32>
    %16 = arith.maximumf %14, %15 : vector<128x32xf32>
    %17 = arith.truncf %16 : vector<128x32xf32> to vector<128x32xbf16>
    %c0_12 = arith.constant 0 : index
    %c0_13 = arith.constant 0 : index
    %18 = vector.load %arg6[%c0_12, %c0_13] : memref<32x128xbf16, #tpu.memory_space<vmem>>, vector<32x128xbf16>
    %cst_14 = arith.constant dense<0.000000e+00> : vector<128x128xf32>
    %19 = tpu.matmul %17, %18, %cst_14 {dimension_numbers = #tpu.dot_dimension_numbers<[1], [0], [0], [1], [0, 0, 1, 1], [], []>} : vector<128x32xbf16>, vector<32x128xbf16>, vector<128x128xf32> -> vector<128x128xf32>
    %c0_15 = arith.constant 0 : index
    %c0_16 = arith.constant 0 : index
    %20 = vector.load %arg7[%c0_15, %c0_16] : memref<1x128xf32, #tpu.memory_space<vmem>>, vector<1x128xf32>
    %21 = vector.broadcast %20 : vector<1x128xf32> to vector<128x128xf32>
    %22 = arith.addf %19, %21 : vector<128x128xf32>
    %23 = math.tanh %22 : vector<128x128xf32>
    %c0_17 = arith.constant 0 : index
    %c0_18 = arith.constant 0 : index
    %24 = vector.load %arg8[%c0_17, %c0_18] : memref<128x128xf32, #tpu.memory_space<vmem>>, vector<128x128xf32>
    tpu.vector_store %arg8[%c0_17, %c0_18], %23 {strides = array<i32>} : memref<128x128xf32, #tpu.memory_space<vmem>>, vector<128x128xf32>,
    return
  }
  func.func @transform_0(%arg0: i32) -> (i32, i32) {
    %c0_i32 = arith.constant 0 : i32
    %c0_i32_0 = arith.constant 0 : i32
    return %arg0, %c0_i32 : i32, i32
  }
  func.func @transform_1(%arg0: i32) -> (i32, i32) {
    %c0_i32 = arith.constant 0 : i32
    %c0_i32_0 = arith.constant 0 : i32
    %c0_i32_1 = arith.constant 0 : i32
    return %c0_i32, %c0_i32_0 : i32, i32
  }
  func.func @transform_2(%arg0: i32) -> (i32, i32) {
    %c0_i32 = arith.constant 0 : i32
    %c0_i32_0 = arith.constant 0 : i32
    %c0_i32_1 = arith.constant 0 : i32
    return %c0_i32, %c0_i32_0 : i32, i32
  }
  func.func @transform_3(%arg0: i32) -> (i32, i32) {
    %c0_i32 = arith.constant 0 : i32
    %c0_i32_0 = arith.constant 0 : i32
    %c0_i32_1 = arith.constant 0 : i32
    return %c0_i32, %c0_i32_0 : i32, i32
  }
  func.func @transform_4(%arg0: i32) -> (i32, i32) {
    %c0_i32 = arith.constant 0 : i32
    %c0_i32_0 = arith.constant 0 : i32
    %c0_i32_1 = arith.constant 0 : i32
    return %c0_i32, %c0_i32_0 : i32, i32
  }
  func.func @transform_5(%arg0: i32) -> (i32, i32) {
    %c0_i32 = arith.constant 0 : i32
    %c0_i32_0 = arith.constant 0 : i32
    %c0_i32_1 = arith.constant 0 : i32
    return %c0_i32, %c0_i32_0 : i32, i32
  }
  func.func @transform_6(%arg0: i32) -> (i32, i32) {
    %c0_i32 = arith.constant 0 : i32
    %c0_i32_0 = arith.constant 0 : i32
    %c0_i32_1 = arith.constant 0 : i32
    return %c0_i32, %c0_i32_0 : i32, i32
  }
  func.func @transform_7(%arg0: i32) -> (i32, i32) {
    %c0_i32 = arith.constant 0 : i32
    %c0_i32_0 = arith.constant 0 : i32
    return %arg0, %c0_i32 : i32, i32
  }
}

</mosaic_0001>

<llo_original>
// kernel: tpu_custom_call.1
$region0: #{tpu_custom_call.1}
  #allocation0 [shape = 'u32[]', space=smem, size = 0x4, offset = 0x4, fixed_abs, tag = 'smem constant byte address 0x4 - core index']
  #allocation1 [shape = 'u32[144,128]{1,0:T(1,128)}', space=vmem, size = 0x12000, scoped, tag = 'internal scratch']
  %s0 = inlined_call_operand.vmem [shape: f32[128,8], index: 0, kind: input, shape index: {}]
  %s1 = inlined_call_operand.vmem [shape: bf16[8,32], index: 1, kind: input, shape index: {}]
  %s2 = inlined_call_operand.vmem [shape: f32[1,32], index: 2, kind: input, shape index: {}]
  %s3 = inlined_call_operand.vmem [shape: bf16[32,32], index: 3, kind: input, shape index: {}]
  %s4 = inlined_call_operand.vmem [shape: f32[1,32], index: 4, kind: input, shape index: {}]
  %s5 = inlined_call_operand.vmem [shape: bf16[32,128], index: 5, kind: input, shape index: {}]
  %s6 = inlined_call_operand.vmem [shape: f32[1,128], index: 6, kind: input, shape index: {}]
  %s7 = inlined_call_operand.hbm [shape: f32[128,128], index: 7, kind: output, shape index: {}]
  %s8 = sld [smem:[#allocation0]]
  $region38: #{tpu_custom_call.1} parent=0
    _
  %s10 = ssub.s32 1, %s8
  %s11 = scalar_select 0, %s10, %s8
  $region1: #{tpu_custom_call.1} parent=0
    #allocation2 [shape = 'u8[65536]{0}', space=vmem, size = 0x10000, scoped, tag = 'output window, operand 0, single buffered']
    #allocation3 [shape = 's32[1]{0}', space=sflag, size = 0x4, scoped, tag = 'scoped memory for tpu_custom_call.1']
    %12 = vsyncpa [#allocation3], 0
    // Predicated region
    $region2: #{tpu_custom_call.1} parent=1 // pred_check
      _
    $region3: #{tpu_custom_call.1} parent=1 // pred_check_branch
      %14 = sbr.rel (0) target = $region5
    $region4: #{tpu_custom_call.1} parent=1 // pred_region
      _
    $region5: #{tpu_custom_call.1} parent=1 // pred_fallthru
      _
    // Predicated region
    $region6: #{tpu_custom_call.1} parent=1 // pred_check
      _
    $region7: #{tpu_custom_call.1} parent=1 // pred_check_branch
      %16 = sbr.rel (0) target = $region9
    $region8: #{tpu_custom_call.1} parent=1 // pred_region
      _
    $region9: #{tpu_custom_call.1} parent=1 // pred_fallthru
      _
    // Predicated region
    $region10: #{tpu_custom_call.1} parent=1 // pred_check
      _
    $region11: #{tpu_custom_call.1} parent=1 // pred_check_branch
      %18 = sbr.rel (0) target = $region13
    $region12: #{tpu_custom_call.1} parent=1 // pred_region
      _
    $region13: #{tpu_custom_call.1} parent=1 // pred_fallthru
      _
    // Predicated region
    $region14: #{tpu_custom_call.1} parent=1 // pred_check
      _
    $region15: #{tpu_custom_call.1} parent=1 // pred_check_branch
      %20 = sbr.rel (0) target = $region17
    $region16: #{tpu_custom_call.1} parent=1 // pred_region
      _
    $region17: #{tpu_custom_call.1} parent=1 // pred_fallthru
      _
    // Predicated region
    $region18: #{tpu_custom_call.1} parent=1 // pred_check
      _
    $region19: #{tpu_custom_call.1} parent=1 // pred_check_branch
      %22 = sbr.rel (0) target = $region21
    $region20: #{tpu_custom_call.1} parent=1 // pred_region
      _
    $region21: #{tpu_custom_call.1} parent=1 // pred_fallthru
      _
    // Predicated region
    $region22: #{tpu_custom_call.1} parent=1 // pred_check
      _
    $region23: #{tpu_custom_call.1} parent=1 // pred_check_branch
      %24 = sbr.rel (0) target = $region25
    $region24: #{tpu_custom_call.1} parent=1 // pred_region
      _
    $region25: #{tpu_custom_call.1} parent=1 // pred_fallthru
      _
    // Predicated region
    $region26: #{tpu_custom_call.1} parent=1 // pred_check
      _
    $region27: #{tpu_custom_call.1} parent=1 // pred_check_branch
      %26 = sbr.rel (0) target = $region29
    $region28: #{tpu_custom_call.1} parent=1 // pred_region
      _
    $region29: #{tpu_custom_call.1} parent=1 // pred_fallthru
      _
    %v28 = vld [vmem:[%s0] sm:$0xff]
    %v29 = vld [vmem:[%s0 + $0x8] sm:$0xff]
    %v30 = vld [vmem:[%s0 + $0x10] sm:$0xff]
    %v31 = vld [vmem:[%s0 + $0x18] sm:$0xff]
    %v32 = vld [vmem:[%s0 + $0x20] sm:$0xff]
    %v33 = vld [vmem:[%s0 + $0x28] sm:$0xff]
    %v34 = vld [vmem:[%s0 + $0x30] sm:$0xff]
    %v35 = vld [vmem:[%s0 + $0x38] sm:$0xff]
    %v36 = vld [vmem:[%s0 + $0x40] sm:$0xff]
    %v37 = vld [vmem:[%s0 + $0x48] sm:$0xff]
    %v38 = vld [vmem:[%s0 + $0x50] sm:$0xff]
    %v39 = vld [vmem:[%s0 + $0x58] sm:$0xff]
    %v40 = vld [vmem:[%s0 + $0x60] sm:$0xff]
    %v41 = vld [vmem:[%s0 + $0x68] sm:$0xff]
    %v42 = vld [vmem:[%s0 + $0x70] sm:$0xff]
    %v43 = vld [vmem:[%s0 + $0x78] sm:$0xff]
    %v44 = vpack.c.bf16 %v29, %v28
    %v45 = vpack.c.bf16 %v31, %v30
    %v46 = vpack.c.bf16 %v33, %v32
    %v47 = vpack.c.bf16 %v35, %v34
    %v48 = vpack.c.bf16 %v37, %v36
    %v49 = vpack.c.bf16 %v39, %v38
    %v50 = vpack.c.bf16 %v41, %v40
    %v51 = vpack.c.bf16 %v43, %v42
    %v52 = vld [vmem:[%s1] sm:$0xf]
    %v53 = vld [vmem:[%s2] sm:$0x1]
    %v55 = vlaneseq
    %v56 = vshrl.u32 %v55, 7
    %v57 = vsub.s32 0, %v56
    %v58 = vrot.slane %v53, %v57
    %vm60 = vcmask 64512
    %v62 = vsel %vm60, %v44, 0
    %v65 = vsel %vm60, %v45, 0
    %v68 = vsel %vm60, %v46, 0
    %v71 = vsel %vm60, %v47, 0
    %v74 = vsel %vm60, %v48, 0
    %v77 = vsel %vm60, %v49, 0
    %v80 = vsel %vm60, %v50, 0
    %v83 = vsel %vm60, %v51, 0
    %vm85 = vcmask 1043456
    %v87 = vsel %vm85, %v52, 0
    %89 = vmatprep.subr.bf16.mxu0 0
    %90 = vmatpush1.bf16.msra.mxu0 0
    %91 = vmatprep.subr.bf16.mxu0 0
    %92 = vmatpush1.bf16.msra.mxu0 0
    %93 = vmatprep.subr.bf16.mxu0 0
    %94 = vmatpush1.bf16.msra.mxu0 0
    %95 = vmatprep.subr.bf16.mxu0 0
    %96 = vmatpush1.bf16.msra.mxu0 0
    %97 = vmatprep.subr.bf16.mxu0 0
    %98 = vmatpush1.bf16.msra.mxu0 0
    %99 = vmatprep.subr.bf16.mxu0 0
    %100 = vmatpush1.bf16.msra.mxu0 0
    %101 = vmatprep.subr.bf16.mxu0 0
    %102 = vmatpush1.bf16.msra.mxu0 0
    %103 = vmatprep.subr.bf16.mxu0 0
    %104 = vmatpush1.bf16.msra.mxu0 %v87
    %105 = vmatprep.subr.bf16.mxu0 0
    %106 = vmatpush2.bf16.msra.mxu0 0
    %107 = vmatprep.subr.bf16.mxu0 0
    %108 = vmatpush2.bf16.msra.mxu0 0
    %109 = vmatprep.subr.bf16.mxu0 0
    %110 = vmatpush2.bf16.msra.mxu0 0
    %111 = vmatprep.subr.bf16.mxu0 0
    %112 = vmatpush2.bf16.msra.mxu0 0
    %113 = vmatprep.subr.bf16.mxu0 0
    %114 = vmatpush2.bf16.msra.mxu0 0
    %115 = vmatprep.subr.bf16.mxu0 0
    %116 = vmatpush2.bf16.msra.mxu0 0
    %117 = vmatprep.subr.bf16.mxu0 0
    %118 = vmatpush2.bf16.msra.mxu0 0
    %119 = vmatprep.subr.bf16.mxu0 0
    %120 = vmatpush2.bf16.msra.mxu0 0
    %121 = vmatprep.mubr.bf16.mxu0 0
    %122 = vmatmul.mubr.bf16.gmra.mxu0 %v62
    %v123 = vpop.f32.mrf.mxu0
    %v124 = vadd.f32 %v58, %v123
    %v125 = vpop.f32.mrf.mxu0
    %v126 = vpop.f32.mrf.mxu0
    %v127 = vadd.f32 %v58, %v126
    %v128 = vpop.f32.mrf.mxu0
    %129 = vmatprep.mubr.bf16.mxu0 0
    %130 = vmatmul.mubr.bf16.gmra.mxu0 %v65
    %v131 = vpop.f32.mrf.mxu0
    %v132 = vadd.f32 %v58, %v131
    %v133 = vpop.f32.mrf.mxu0
    %v134 = vpop.f32.mrf.mxu0
    %v135 = vadd.f32 %v58, %v134
    %v136 = vpop.f32.mrf.mxu0
    %137 = vmatprep.mubr.bf16.mxu0 0
    %138 = vmatmul.mubr.bf16.gmra.mxu0 %v68
    %v139 = vpop.f32.mrf.mxu0
    %v140 = vadd.f32 %v58, %v139
    %v141 = vpop.f32.mrf.mxu0
    %v142 = vpop.f32.mrf.mxu0
    %v143 = vadd.f32 %v58, %v142
    %v144 = vpop.f32.mrf.mxu0
    %145 = vmatprep.mubr.bf16.mxu0 0
    %146 = vmatmul.mubr.bf16.gmra.mxu0 %v71
    %v147 = vpop.f32.mrf.mxu0
    %v148 = vadd.f32 %v58, %v147
    %v149 = vpop.f32.mrf.mxu0
    %v150 = vpop.f32.mrf.mxu0
    %v151 = vadd.f32 %v58, %v150
    %v152 = vpop.f32.mrf.mxu0
    %153 = vmatprep.mubr.bf16.mxu0 0
    %154 = vmatmul.mubr.bf16.gmra.mxu0 %v74
    %v155 = vpop.f32.mrf.mxu0
    %v156 = vadd.f32 %v58, %v155
    %v157 = vpop.f32.mrf.mxu0
    %v158 = vpop.f32.mrf.mxu0
    %v159 = vadd.f32 %v58, %v158
    %v160 = vpop.f32.mrf.mxu0
    %161 = vmatprep.mubr.bf16.mxu0 0
    %162 = vmatmul.mubr.bf16.gmra.mxu0 %v77
    %v163 = vpop.f32.mrf.mxu0
    %v164 = vadd.f32 %v58, %v163
    %v165 = vpop.f32.mrf.mxu0
    %v166 = vpop.f32.mrf.mxu0
    %v167 = vadd.f32 %v58, %v166
    %v168 = vpop.f32.mrf.mxu0
    %169 = vmatprep.mubr.bf16.mxu0 0
    %170 = vmatmul.mubr.bf16.gmra.mxu0 %v80
    %v171 = vpop.f32.mrf.mxu0
    %v172 = vadd.f32 %v58, %v171
    %v173 = vpop.f32.mrf.mxu0
    %v174 = vpop.f32.mrf.mxu0
    %v175 = vadd.f32 %v58, %v174
    %v176 = vpop.f32.mrf.mxu0
    %177 = vmatprep.mubr.bf16.mxu0 0
    %178 = vmatmul.mubr.bf16.gmra.mxu0 %v83
    %v179 = vpop.f32.mrf.mxu0
    %v180 = vadd.f32 %v58, %v179
    %v181 = vpop.f32.mrf.mxu0
    %v182 = vpop.f32.mrf.mxu0
    %v183 = vadd.f32 %v58, %v182
    %v184 = vpop.f32.mrf.mxu0
    %185 = vdwg.mxu0
    %v186 = vmax.f32 %v124, 0.0
    %v187 = vmax.f32 %v127, 0.0
    %v188 = vmax.f32 %v132, 0.0
    %v189 = vmax.f32 %v135, 0.0
    %v190 = vmax.f32 %v140, 0.0
    %v191 = vmax.f32 %v143, 0.0
    %v192 = vmax.f32 %v148, 0.0
    %v193 = vmax.f32 %v151, 0.0
    %v194 = vmax.f32 %v156, 0.0
    %v195 = vmax.f32 %v159, 0.0
    %v196 = vmax.f32 %v164, 0.0
    %v197 = vmax.f32 %v167, 0.0
    %v198 = vmax.f32 %v172, 0.0
    %v199 = vmax.f32 %v175, 0.0
    %v200 = vmax.f32 %v180, 0.0
    %v201 = vmax.f32 %v183, 0.0
    %v202 = vpack.c.bf16 %v187, %v186
    %v203 = vpack.c.bf16 %v189, %v188
    %v204 = vpack.c.bf16 %v191, %v190
    %v205 = vpack.c.bf16 %v193, %v192
    %v206 = vpack.c.bf16 %v195, %v194
    %v207 = vpack.c.bf16 %v197, %v196
    %v208 = vpack.c.bf16 %v199, %v198
    %v209 = vpack.c.bf16 %v201, %v200
    %v210 = vld [vmem:[%s3] sm:$0xf]
    %v211 = vld [vmem:[%s3 + $0x4] sm:$0xf]
    %v212 = vld [vmem:[%s3 + $0x8] sm:$0xf]
    %v213 = vld [vmem:[%s3 + $0xc] sm:$0xf]
    %v214 = vld [vmem:[%s4] sm:$0x1]
    %v216 = vlaneseq
    %v217 = vshrl.u32 %v216, 7
    %v218 = vsub.s32 0, %v217
    %v219 = vrot.slane %v214, %v218
    %v225 = vunpack.c.l.b16 %v210
    %v226 = vunpack.c.l.b16 %v211
    %v227 = vunpack.c.l.b16 %v212
    %v228 = vunpack.c.l.b16 %v213
    %v229 = vpack.c.b16 %v226, %v225
    %v230 = vpack.c.b16 %v228, %v227
    %vm233 = vcmask 261120
    %v235 = vsel %vm233, %v202, 0
    %v238 = vsel %vm233, %v203, 0
    %v241 = vsel %vm233, %v204, 0
    %v244 = vsel %vm233, %v205, 0
    %v247 = vsel %vm233, %v206, 0
    %v250 = vsel %vm233, %v207, 0
    %v253 = vsel %vm233, %v208, 0
    %v256 = vsel %vm233, %v209, 0
    %258 = vmatprep.subr.bf16.mxu0 0
    %259 = vmatpush1.bf16.msra.mxu0 0
    %260 = vmatprep.subr.bf16.mxu0 0
    %261 = vmatpush1.bf16.msra.mxu0 0
    %262 = vmatprep.subr.bf16.mxu0 0
    %263 = vmatpush1.bf16.msra.mxu0 0
    %264 = vmatprep.subr.bf16.mxu0 0
    %265 = vmatpush1.bf16.msra.mxu0 0
    %266 = vmatprep.subr.bf16.mxu0 0
    %267 = vmatpush1.bf16.msra.mxu0 0
    %268 = vmatprep.subr.bf16.mxu0 0
    %269 = vmatpush1.bf16.msra.mxu0 0
    %270 = vmatprep.subr.bf16.mxu0 0
    %271 = vmatpush1.bf16.msra.mxu0 %v230
    %272 = vmatprep.subr.bf16.mxu0 0
    %273 = vmatpush1.bf16.msra.mxu0 %v229
    %274 = vmatprep.subr.bf16.mxu0 0
    %275 = vmatpush2.bf16.msra.mxu0 0
    %276 = vmatprep.subr.bf16.mxu0 0
    %277 = vmatpush2.bf16.msra.mxu0 0
    %278 = vmatprep.subr.bf16.mxu0 0
    %279 = vmatpush2.bf16.msra.mxu0 0
    %280 = vmatprep.subr.bf16.mxu0 0
    %281 = vmatpush2.bf16.msra.mxu0 0
    %282 = vmatprep.subr.bf16.mxu0 0
    %283 = vmatpush2.bf16.msra.mxu0 0
    %284 = vmatprep.subr.bf16.mxu0 0
    %285 = vmatpush2.bf16.msra.mxu0 0
    %286 = vmatprep.subr.bf16.mxu0 0
    %287 = vmatpush2.bf16.msra.mxu0 0
    %288 = vmatprep.subr.bf16.mxu0 0
    %289 = vmatpush2.bf16.msra.mxu0 0
    %290 = vmatprep.mubr.bf16.mxu0 0
    %291 = vmatmul.mubr.bf16.gmra.mxu0 %v235
    %v292 = vpop.f32.mrf.mxu0
    %v293 = vadd.f32 %v219, %v292
    %v294 = vpop.f32.mrf.mxu0
    %v295 = vpop.f32.mrf.mxu0
    %v296 = vadd.f32 %v219, %v295
    %v297 = vpop.f32.mrf.mxu0
    %298 = vmatprep.mubr.bf16.mxu0 0
    %299 = vmatmul.mubr.bf16.gmra.mxu0 %v238
    %v300 = vpop.f32.mrf.mxu0
    %v301 = vadd.f32 %v219, %v300
    %v302 = vpop.f32.mrf.mxu0
    %v303 = vpop.f32.mrf.mxu0
    %v304 = vadd.f32 %v219, %v303
    %v305 = vpop.f32.mrf.mxu0
    %306 = vmatprep.mubr.bf16.mxu0 0
    %307 = vmatmul.mubr.bf16.gmra.mxu0 %v241
    %v308 = vpop.f32.mrf.mxu0
    %v309 = vadd.f32 %v219, %v308
    %v310 = vpop.f32.mrf.mxu0
    %v311 = vpop.f32.mrf.mxu0
    %v312 = vadd.f32 %v219, %v311
    %v313 = vpop.f32.mrf.mxu0
    %314 = vmatprep.mubr.bf16.mxu0 0
    %315 = vmatmul.mubr.bf16.gmra.mxu0 %v244
    %v316 = vpop.f32.mrf.mxu0
    %v317 = vadd.f32 %v219, %v316
    %v318 = vpop.f32.mrf.mxu0
    %v319 = vpop.f32.mrf.mxu0
    %v320 = vadd.f32 %v219, %v319
    %v321 = vpop.f32.mrf.mxu0
    %322 = vmatprep.mubr.bf16.mxu0 0
    %323 = vmatmul.mubr.bf16.gmra.mxu0 %v247
    %v324 = vpop.f32.mrf.mxu0
    %v325 = vadd.f32 %v219, %v324
    %v326 = vpop.f32.mrf.mxu0
    %v327 = vpop.f32.mrf.mxu0
    %v328 = vadd.f32 %v219, %v327
    %v329 = vpop.f32.mrf.mxu0
    %330 = vmatprep.mubr.bf16.mxu0 0
    %331 = vmatmul.mubr.bf16.gmra.mxu0 %v250
    %v332 = vpop.f32.mrf.mxu0
    %v333 = vadd.f32 %v219, %v332
    %v334 = vpop.f32.mrf.mxu0
    %v335 = vpop.f32.mrf.mxu0
    %v336 = vadd.f32 %v219, %v335
    %v337 = vpop.f32.mrf.mxu0
    %338 = vmatprep.mubr.bf16.mxu0 0
    %339 = vmatmul.mubr.bf16.gmra.mxu0 %v253
    %v340 = vpop.f32.mrf.mxu0
    %v341 = vadd.f32 %v219, %v340
    %v342 = vpop.f32.mrf.mxu0
    %v343 = vpop.f32.mrf.mxu0
    %v344 = vadd.f32 %v219, %v343
    %v345 = vpop.f32.mrf.mxu0
    %346 = vmatprep.mubr.bf16.mxu0 0
    %347 = vmatmul.mubr.bf16.gmra.mxu0 %v256
    %v348 = vpop.f32.mrf.mxu0
    %v349 = vadd.f32 %v219, %v348
    %v350 = vpop.f32.mrf.mxu0
    %v351 = vpop.f32.mrf.mxu0
    %v352 = vadd.f32 %v219, %v351
    %v353 = vpop.f32.mrf.mxu0
    %354 = vdwg.mxu0
    %v355 = vmax.f32 %v293, 0.0
    %v356 = vmax.f32 %v296, 0.0
    %v357 = vmax.f32 %v301, 0.0
    %v358 = vmax.f32 %v304, 0.0
    %v359 = vmax.f32 %v309, 0.0
    %v360 = vmax.f32 %v312, 0.0
    %v361 = vmax.f32 %v317, 0.0
    %v362 = vmax.f32 %v320, 0.0
    %v363 = vmax.f32 %v325, 0.0
    %v364 = vmax.f32 %v328, 0.0
    %v365 = vmax.f32 %v333, 0.0
    %v366 = vmax.f32 %v336, 0.0
    %v367 = vmax.f32 %v341, 0.0
    %v368 = vmax.f32 %v344, 0.0
    %v369 = vmax.f32 %v349, 0.0
    %v370 = vmax.f32 %v352, 0.0
    %v371 = vpack.c.bf16 %v356, %v355
    %v372 = vpack.c.bf16 %v358, %v357
    %v373 = vpack.c.bf16 %v360, %v359
    %v374 = vpack.c.bf16 %v362, %v361
    %v375 = vpack.c.bf16 %v364, %v363
    %v376 = vpack.c.bf16 %v366, %v365
    %v377 = vpack.c.bf16 %v368, %v367
    %v378 = vpack.c.bf16 %v370, %v369
    %v379 = vld [vmem:[%s5] sm:$0xf]
    %v380 = vld [vmem:[%s5 + $0x4] sm:$0xf]
    %v381 = vld [vmem:[%s5 + $0x8] sm:$0xf]
    %v382 = vld [vmem:[%s5 + $0xc] sm:$0xf]
    %v383 = vld [vmem:[%s6] sm:$0x1]
    %v385 = vlaneseq
    %v386 = vshrl.u32 %v385, 7
    %v387 = vsub.s32 0, %v386
    %v388 = vrot.slane %v383, %v387
    %v394 = vunpack.c.l.b16 %v379
    %v395 = vunpack.c.l.b16 %v380
    %v396 = vunpack.c.l.b16 %v381
    %v397 = vunpack.c.l.b16 %v382
    %v398 = vpack.c.b16 %v395, %v394
    %v399 = vpack.c.b16 %v397, %v396
    %v403 = vsel %vm233, %v371, 0
    %v406 = vsel %vm233, %v372, 0
    %v409 = vsel %vm233, %v373, 0
    %v412 = vsel %vm233, %v374, 0
    %v415 = vsel %vm233, %v375, 0
    %v418 = vsel %vm233, %v376, 0
    %v421 = vsel %vm233, %v377, 0
    %v424 = vsel %vm233, %v378, 0
    %426 = vmatprep.subr.bf16.mxu0 0
    %427 = vmatpush1.bf16.msra.mxu0 0
    %428 = vmatprep.subr.bf16.mxu0 0
    %429 = vmatpush1.bf16.msra.mxu0 0
    %430 = vmatprep.subr.bf16.mxu0 0
    %431 = vmatpush1.bf16.msra.mxu0 0
    %432 = vmatprep.subr.bf16.mxu0 0
    %433 = vmatpush1.bf16.msra.mxu0 0
    %434 = vmatprep.subr.bf16.mxu0 0
    %435 = vmatpush1.bf16.msra.mxu0 0
    %436 = vmatprep.subr.bf16.mxu0 0
    %437 = vmatpush1.bf16.msra.mxu0 0
    %438 = vmatprep.subr.bf16.mxu0 0
    %439 = vmatpush1.bf16.msra.mxu0 %v399
    %440 = vmatprep.subr.bf16.mxu0 0
    %441 = vmatpush1.bf16.msra.mxu0 %v398
    %442 = vmatprep.subr.bf16.mxu0 0
    %443 = vmatpush2.bf16.msra.mxu0 0
    %444 = vmatprep.subr.bf16.mxu0 0
    %445 = vmatpush2.bf16.msra.mxu0 0
    %446 = vmatprep.subr.bf16.mxu0 0
    %447 = vmatpush2.bf16.msra.mxu0 0
    %448 = vmatprep.subr.bf16.mxu0 0
    %449 = vmatpush2.bf16.msra.mxu0 0
    %450 = vmatprep.subr.bf16.mxu0 0
    %451 = vmatpush2.bf16.msra.mxu0 0
    %452 = vmatprep.subr.bf16.mxu0 0
    %453 = vmatpush2.bf16.msra.mxu0 0
    %454 = vmatprep.subr.bf16.mxu0 0
    %455 = vmatpush2.bf16.msra.mxu0 0
    %456 = vmatprep.subr.bf16.mxu0 0
    %457 = vmatpush2.bf16.msra.mxu0 0
    %458 = vmatprep.mubr.bf16.mxu0 0
    %459 = vmatmul.mubr.bf16.gmra.mxu0 %v403
    %v460 = vpop.f32.mrf.mxu0
    %v461 = vadd.f32 %v388, %v460
    %v462 = vpop.f32.mrf.mxu0
    %v463 = vpop.f32.mrf.mxu0
    %v464 = vadd.f32 %v388, %v463
    %v465 = vpop.f32.mrf.mxu0
    %466 = vmatprep.mubr.bf16.mxu0 0
    %467 = vmatmul.mubr.bf16.gmra.mxu0 %v406
    %v468 = vpop.f32.mrf.mxu0
    %v469 = vadd.f32 %v388, %v468
    %v470 = vpop.f32.mrf.mxu0
    %v471 = vpop.f32.mrf.mxu0
    %v472 = vadd.f32 %v388, %v471
    %v473 = vpop.f32.mrf.mxu0
    %474 = vmatprep.mubr.bf16.mxu0 0
    %475 = vmatmul.mubr.bf16.gmra.mxu0 %v409
    %v476 = vpop.f32.mrf.mxu0
    %v477 = vadd.f32 %v388, %v476
    %v478 = vpop.f32.mrf.mxu0
    %v479 = vpop.f32.mrf.mxu0
    %v480 = vadd.f32 %v388, %v479
    %v481 = vpop.f32.mrf.mxu0
    %482 = vmatprep.mubr.bf16.mxu0 0
    %483 = vmatmul.mubr.bf16.gmra.mxu0 %v412
    %v484 = vpop.f32.mrf.mxu0
    %v485 = vadd.f32 %v388, %v484
    %v486 = vpop.f32.mrf.mxu0
    %v487 = vpop.f32.mrf.mxu0
    %v488 = vadd.f32 %v388, %v487
    %v489 = vpop.f32.mrf.mxu0
    %490 = vmatprep.mubr.bf16.mxu0 0
    %491 = vmatmul.mubr.bf16.gmra.mxu0 %v415
    %v492 = vpop.f32.mrf.mxu0
    %v493 = vadd.f32 %v388, %v492
    %v494 = vpop.f32.mrf.mxu0
    %v495 = vpop.f32.mrf.mxu0
    %v496 = vadd.f32 %v388, %v495
    %v497 = vpop.f32.mrf.mxu0
    %498 = vmatprep.mubr.bf16.mxu0 0
    %499 = vmatmul.mubr.bf16.gmra.mxu0 %v418
    %v500 = vpop.f32.mrf.mxu0
    %v501 = vadd.f32 %v388, %v500
    %v502 = vpop.f32.mrf.mxu0
    %v503 = vpop.f32.mrf.mxu0
    %v504 = vadd.f32 %v388, %v503
    %v505 = vpop.f32.mrf.mxu0
    %506 = vmatprep.mubr.bf16.mxu0 0
    %507 = vmatmul.mubr.bf16.gmra.mxu0 %v421
    %v508 = vpop.f32.mrf.mxu0
    %v509 = vadd.f32 %v388, %v508
    %v510 = vpop.f32.mrf.mxu0
    %v511 = vpop.f32.mrf.mxu0
    %v512 = vadd.f32 %v388, %v511
    %v513 = vpop.f32.mrf.mxu0
    %514 = vmatprep.mubr.bf16.mxu0 0
    %515 = vmatmul.mubr.bf16.gmra.mxu0 %v424
    %v516 = vpop.f32.mrf.mxu0
    %v517 = vadd.f32 %v388, %v516
    %v518 = vpop.f32.mrf.mxu0
    %v519 = vpop.f32.mrf.mxu0
    %v520 = vadd.f32 %v388, %v519
    %v521 = vpop.f32.mrf.mxu0
    %522 = vdwg.mxu0
    %v523 = vtanh.pop %v461
    %v524 = vtanh.pop %v464
    %v525 = vtanh.pop %v469
    %v526 = vtanh.pop %v472
    %v527 = vtanh.pop %v477
    %v528 = vtanh.pop %v480
    %v529 = vtanh.pop %v485
    %v530 = vtanh.pop %v488
    %v531 = vtanh.pop %v493
    %v532 = vtanh.pop %v496
    %v533 = vtanh.pop %v501
    %v534 = vtanh.pop %v504
    %v535 = vtanh.pop %v509
    %v536 = vtanh.pop %v512
    %v537 = vtanh.pop %v517
    %v538 = vtanh.pop %v520
    %539 = vst [vmem:[#allocation2] sm:$0xff] %v523
    %540 = vst [vmem:[#allocation2 + $0x8] sm:$0xff] %v524
    %541 = vst [vmem:[#allocation2 + $0x10] sm:$0xff] %v525
    %542 = vst [vmem:[#allocation2 + $0x18] sm:$0xff] %v526
    %543 = vst [vmem:[#allocation2 + $0x20] sm:$0xff] %v527
    %544 = vst [vmem:[#allocation2 + $0x28] sm:$0xff] %v528
    %545 = vst [vmem:[#allocation2 + $0x30] sm:$0xff] %v529
    %546 = vst [vmem:[#allocation2 + $0x38] sm:$0xff] %v530
    %547 = vst [vmem:[#allocation2 + $0x40] sm:$0xff] %v531
    %548 = vst [vmem:[#allocation2 + $0x48] sm:$0xff] %v532
    %549 = vst [vmem:[#allocation2 + $0x50] sm:$0xff] %v533
    %550 = vst [vmem:[#allocation2 + $0x58] sm:$0xff] %v534
    %551 = vst [vmem:[#allocation2 + $0x60] sm:$0xff] %v535
    %552 = vst [vmem:[#allocation2 + $0x68] sm:$0xff] %v536
    %553 = vst [vmem:[#allocation2 + $0x70] sm:$0xff] %v537
    %554 = vst [vmem:[#allocation2 + $0x78] sm:$0xff] %v538
    // Predicated region
    $region30: #{tpu_custom_call.1} parent=1 // pred_check
      _
    $region31: #{tpu_custom_call.1} parent=1 // pred_check_branch
      %556 = sbr.rel (0) target = $region33
    $region32: #{tpu_custom_call.1} parent=1 // pred_region
      %s558 = ssub.s32 2048, 2048
      %559 = vsyncadd [#allocation3], %s558
      %s560 = sshll.u32 [#allocation2], 4
      %s561 = int_to_ptr.vmem [resolvable:$true] %s560
      %566 = dma.vmem_to_hbm [thread:$0]  %s561, 2048, %s7, [#allocation3], 128, 128, 8
    $region33: #{tpu_custom_call.1} parent=1 // pred_fallthru
      _
    // Predicated region
    $region34: #{tpu_custom_call.1} parent=1 // pred_check
      _
    $region35: #{tpu_custom_call.1} parent=1 // pred_check_branch
      %568 = sbr.rel (0) target = $region37
    $region36: #{tpu_custom_call.1} parent=1 // pred_region
      %569 = dma.done [#allocation3], 2048
    $region37: #{tpu_custom_call.1} parent=1 // pred_fallthru
      _
    %570 = vsyncpa [#allocation3], 1

</llo_original>
